<compile_context>
chip_gen: v7x
topology: tpu7x:2x2x1
jax: 0.10.0
libtpu: 0.0.40
codegen_flags: <defaults>
</compile_context>

<pallas_src>
import functools

import jax
import jax.numpy as jnp
from jax.experimental import pallas as pl
from jax.experimental.pallas import tpu as pltpu


def _dice_ce_partials_kernel(x_ref, t_ref, out_ref, *, num_classes):
    """One grid step == one (batch, spatial-tile) block.

    x_ref  : (1, C, TS) logits tile (native dtype, upcast here)
    t_ref  : (1, C, TS) probability-target tile (native dtype, upcast here)
    out_ref: (1, 1, C, 4) f32 partials [ce_c, intersection_c, out_sum_c, tgt_sum_c]
    """
    x = x_ref[0].astype(jnp.float32)   # (C, TS)
    t = t_ref[0].astype(jnp.float32)   # (C, TS)

    if num_classes == 1:
        # Single-channel branch of the module: dice uses sigmoid; CE with a
        # single channel has log_softmax == 0 (same as nn.CrossEntropyLoss).
        logp = jnp.zeros_like(x)
        probs = jax.nn.sigmoid(x)
    else:
        m = jnp.max(x, axis=0, keepdims=True)             # (1, TS) sublane reduce
        e = jnp.exp(x - m)                                 # (C, TS) EUP
        denom = jnp.sum(e, axis=0, keepdims=True)          # (1, TS)
        logp = (x - m) - jnp.log(denom)                    # exact log for CE
        probs = e * pl.reciprocal(denom, approx=True)      # dice-only approx recip

    ce_c  = -jnp.sum(t * logp, axis=-1, keepdims=True)     # (C, 1)
    inter = jnp.sum(probs * t, axis=-1, keepdims=True)     # (C, 1)
    osum  = jnp.sum(probs, axis=-1, keepdims=True)         # (C, 1)
    tsum  = jnp.sum(t, axis=-1, keepdims=True)             # (C, 1)

    C = x.shape[0]
    lane = jax.lax.broadcasted_iota(jnp.int32, (C, 4), 1)
    parts = jnp.where(
        lane == 0, jnp.broadcast_to(ce_c, (C, 4)),
        jnp.where(lane == 1, jnp.broadcast_to(inter, (C, 4)),
                  jnp.where(lane == 2, jnp.broadcast_to(osum, (C, 4)),
                            jnp.broadcast_to(tsum, (C, 4)))))
    out_ref[...] = parts[None, None]


def _pick_spatial_tile(S, C, itemsize):
    """Largest multiple of 128 that divides S, capped by a VMEM budget."""
    if S % 128 != 0:
        return S  # single spatial tile; block dim == full array dim is legal
    # 2 inputs x 2 pipeline buffers x (C * TS * itemsize) <= ~8 MiB
    budget_bytes = 8 * 1024 * 1024
    max_ts = max(128, budget_bytes // (4 * C * max(itemsize, 1)))
    target = min(S, 8192, max_ts)
    target -= target % 128
    cand = max(target, 128)
    while cand > 128 and S % cand != 0:
        cand -= 128
    return cand


def dice_ce_loss(outputs, targets, dice_classes_weights,
                 cross_entropy_loss_weight, dice_loss_weight,
                 dice_smooth=1e-5):
    """JAX/Pallas equivalent of DiceCELoss.forward.

    Returns shape (3,): [total, cross_entropy, dice].  `targets` are dense
    probability / one-hot maps with the same shape as `outputs` (the layout
    required by the Dice term of the reference module; soft labels supported).
    """
    assert outputs.shape == targets.shape, "dice term needs dense (N, C, ...) targets"
    N, C = outputs.shape[0], outputs.shape[1]
    S = 1
    for d in outputs.shape[2:]:
        S *= d

    # Keep native dtypes in HBM (bf16 halves DMA traffic); cast inside kernel.
    x = outputs.reshape(N, C, S)
    t = targets.reshape(N, C, S)

    ts = _pick_spatial_tile(S, C, max(x.dtype.itemsize, t.dtype.itemsize))
    n_s = S // ts

    kernel = functools.partial(_dice_ce_partials_kernel, num_classes=C)

    out_bytes = N * n_s * C * 4 * 4
    cost = pl.CostEstimate(
        flops=12 * N * C * S,
        transcendentals=N * C * S + 2 * N * S,
        bytes_accessed=(x.size * x.dtype.itemsize
                        + t.size * t.dtype.itemsize
                        + out_bytes),
    )

    partials = pl.pallas_call(
        kernel,
        out_shape=jax.ShapeDtypeStruct((N, n_s, C, 4), jnp.float32),
        grid_spec=pltpu.PrefetchScalarGridSpec(
            num_scalar_prefetch=0,
            grid=(N, n_s),
            in_specs=[
                pl.BlockSpec((1, C, ts), lambda n, s: (n, 0, s)),  # logits tile
                pl.BlockSpec((1, C, ts), lambda n, s: (n, 0, s)),  # target tile
            ],
            out_specs=pl.BlockSpec((1, 1, C, 4), lambda n, s: (n, s, 0, 0)),
        ),
        compiler_params=pltpu.CompilerParams(
            dimension_semantics=("parallel", "parallel"),  # megacore-friendly
            vmem_limit_bytes=32 * 1024 * 1024,
        ),
        cost_estimate=cost,
    )(x, t)

    # Tiny epilogue in plain JAX: finish reductions, dice formula, weighting.
    ce_c  = partials[..., 0]                    # (N, n_s, C)
    inter = jnp.sum(partials[..., 1], axis=1)   # (N, C)
    osum  = jnp.sum(partials[..., 2], axis=1)   # (N, C)
    tsum  = jnp.sum(partials[..., 3], axis=1)   # (N, C)

    ce = jnp.sum(ce_c) / (N * S)                # CrossEntropyLoss mean reduction

    w = jnp.asarray(dice_classes_weights, jnp.float32)
    w = (w / jnp.sum(w))[None, :]               # (1, C) normalized class weights
    dice = (2.0 * inter + dice_smooth) / (osum + tsum + dice_smooth)   # (N, C)
    dl = jnp.sum((1.0 - dice) * w) / N

    total = ce * cross_entropy_loss_weight + dl * dice_loss_weight
    return jnp.stack([total, ce, dl])


def _reference(outputs, targets, weights, ce_w, dice_w, smooth=1e-5):
    """Pure-JAX reference mirroring the PyTorch module (for sanity checking)."""
    N, C = outputs.shape[0], outputs.shape[1]
    logp = jax.nn.log_softmax(outputs, axis=1)
    ce = -jnp.sum(targets * logp) / (targets.size / C)
    probs = jax.nn.softmax(outputs, axis=1) if C > 1 else jax.nn.sigmoid(outputs)
    axes = tuple(range(2, outputs.ndim))
    inter = jnp.sum(probs * targets, axis=axes)
    osum = jnp.sum(probs, axis=axes)
    tsum = jnp.sum(targets, axis=axes)
    dice = (2.0 * inter + smooth) / (osum + tsum + smooth)
    w = jnp.asarray(weights, jnp.float32)
    w = (w / jnp.sum(w))[None, :]
    dl = jnp.sum((1.0 - dice) * w) / N
    total = ce * ce_w + dl * dice_w
    return jnp.stack([total, ce, dl])


if __name__ == "__main__":
    key = jax.random.PRNGKey(0)
    k1, k2 = jax.random.split(key)

    N, C, H, W = 2, 4, 16, 16
    # bf16 inputs in HBM (the wrapper no longer upcasts; the kernel does).
    logits = jax.random.normal(k1, (N, C, H, W), jnp.float32).astype(jnp.bfloat16)
    labels = jax.random.randint(k2, (N, H, W), 0, C)
    targets = jax.nn.one_hot(labels, C, axis=1, dtype=jnp.bfloat16)  # (N, C, H, W)

    # Deterministic "module parameters" (would come from __init__ in PyTorch).
    dice_classes_weights = [1.0, 2.0, 3.0, 4.0]
    ce_weight, dice_weight = 0.6, 0.4

    result = dice_ce_loss(logits, targets, dice_classes_weights,
                          ce_weight, dice_weight)
    jax.block_until_ready(result)

    ref = _reference(logits.astype(jnp.float32), targets.astype(jnp.float32),
                     dice_classes_weights, ce_weight, dice_weight)

    # CE path is exact f32 math -> tight check.
    assert jnp.allclose(result[1], ref[1], rtol=1e-5, atol=1e-5), (result, ref)
    # Dice/total use the EUP approximate reciprocal for softmax probs -> looser.
    assert jnp.allclose(result, ref, rtol=1e-2, atol=1e-2), (result, ref)

    print("KERNEL_OK")
</pallas_src>

<mosaic_0001>
module attributes {stable_mosaic.version = 11 : i64} {
  func.func @_dice_ce_partials_kernel(%arg0: i32, %arg1: i32, %arg2: memref<1x4x256xbf16, #tpu.memory_space<vmem>>, %arg3: memref<1x4x256xbf16, #tpu.memory_space<vmem>>, %arg4: memref<1x1x4x4xf32, #tpu.memory_space<vmem>>) attributes {dimension_semantics = [#tpu.dimension_semantics<parallel>, #tpu.dimension_semantics<parallel>], iteration_bounds = array<i64: 2, 1>, scalar_prefetch = 0 : i64, scratch_operands = 0 : i64, tpu.core_type = #tpu.core_type<tc>, window_params = [{transform_indices = @transform_0, window_bounds = array<i64: 1, 4, 256>}, {transform_indices = @transform_1, window_bounds = array<i64: 1, 4, 256>}, {transform_indices = @transform_2, window_bounds = array<i64: 1, 1, 4, 4>}]} {
    %c0 = arith.constant 0 : index
    %c0_0 = arith.constant 0 : index
    %c0_1 = arith.constant 0 : index
    %0 = vector.load %arg2[%c0, %c0_0, %c0_1] : memref<1x4x256xbf16, #tpu.memory_space<vmem>>, vector<1x4x256xbf16>
    %1 = vector.shape_cast %0 : vector<1x4x256xbf16> to vector<4x256xbf16>
    %2 = arith.extf %1 : vector<4x256xbf16> to vector<4x256xf32>
    %c0_2 = arith.constant 0 : index
    %c0_3 = arith.constant 0 : index
    %c0_4 = arith.constant 0 : index
    %3 = vector.load %arg3[%c0_2, %c0_3, %c0_4] : memref<1x4x256xbf16, #tpu.memory_space<vmem>>, vector<1x4x256xbf16>
    %4 = vector.shape_cast %3 : vector<1x4x256xbf16> to vector<4x256xbf16>
    %5 = arith.extf %4 : vector<4x256xbf16> to vector<4x256xf32>
    %cst = arith.constant dense<0xFF800000> : vector<256xf32>
    %6 = vector.multi_reduction <maximumf>, %2, %cst [0] : vector<4x256xf32> to vector<256xf32>
    %7 = vector.shape_cast %6 : vector<256xf32> to vector<1x256xf32>
    %8 = vector.broadcast %7 : vector<1x256xf32> to vector<4x256xf32>
    %9 = arith.subf %2, %8 : vector<4x256xf32>
    %10 = math.exp %9 : vector<4x256xf32>
    %cst_5 = arith.constant dense<0.000000e+00> : vector<256xf32>
    %11 = vector.multi_reduction <add>, %10, %cst_5 [0] : vector<4x256xf32> to vector<256xf32>
    %12 = vector.shape_cast %11 : vector<256xf32> to vector<1x256xf32>
    %13 = vector.broadcast %7 : vector<1x256xf32> to vector<4x256xf32>
    %14 = arith.subf %2, %13 : vector<4x256xf32>
    %15 = math.log %12 : vector<1x256xf32>
    %16 = vector.broadcast %15 : vector<1x256xf32> to vector<4x256xf32>
    %17 = arith.subf %14, %16 : vector<4x256xf32>
    %18 = tpu.reciprocal %12 {approx = true} : vector<1x256xf32> -> vector<1x256xf32>
    %19 = vector.broadcast %18 : vector<1x256xf32> to vector<4x256xf32>
    %20 = arith.mulf %10, %19 : vector<4x256xf32>
    %21 = arith.mulf %5, %17 : vector<4x256xf32>
    %cst_6 = arith.constant dense<0.000000e+00> : vector<4xf32>
    %22 = vector.multi_reduction <add>, %21, %cst_6 [1] : vector<4x256xf32> to vector<4xf32>
    %23 = vector.shape_cast %22 : vector<4xf32> to vector<4x1xf32>
    %cst_7 = arith.constant 0.000000e+00 : f32
    %24 = vector.broadcast %cst_7 : f32 to vector<4x1xf32>
    %25 = arith.subf %24, %23 : vector<4x1xf32>
    %26 = arith.mulf %20, %5 : vector<4x256xf32>
    %cst_8 = arith.constant dense<0.000000e+00> : vector<4xf32>
    %27 = vector.multi_reduction <add>, %26, %cst_8 [1] : vector<4x256xf32> to vector<4xf32>
    %28 = vector.shape_cast %27 : vector<4xf32> to vector<4x1xf32>
    %cst_9 = arith.constant dense<0.000000e+00> : vector<4xf32>
    %29 = vector.multi_reduction <add>, %20, %cst_9 [1] : vector<4x256xf32> to vector<4xf32>
    %30 = vector.shape_cast %29 : vector<4xf32> to vector<4x1xf32>
    %cst_10 = arith.constant dense<0.000000e+00> : vector<4xf32>
    %31 = vector.multi_reduction <add>, %5, %cst_10 [1] : vector<4x256xf32> to vector<4xf32>
    %32 = vector.shape_cast %31 : vector<4xf32> to vector<4x1xf32>
    %33 = tpu.iota {dimensions = array<i32: 1>} : vector<4x4xi32>
    %c0_i32 = arith.constant 0 : i32
    %34 = vector.broadcast %c0_i32 : i32 to vector<4x4xi32>
    %35 = arith.cmpi eq, %33, %34 : vector<4x4xi32>
    %36 = vector.shape_cast %25 : vector<4x1xf32> to vector<4x1xf32>
    %37 = vector.broadcast %36 : vector<4x1xf32> to vector<4x4xf32>
    %c1_i32 = arith.constant 1 : i32
    %38 = vector.broadcast %c1_i32 : i32 to vector<4x4xi32>
    %39 = arith.cmpi eq, %33, %38 : vector<4x4xi32>
    %40 = vector.shape_cast %28 : vector<4x1xf32> to vector<4x1xf32>
    %41 = vector.broadcast %40 : vector<4x1xf32> to vector<4x4xf32>
    %c2_i32 = arith.constant 2 : i32
    %42 = vector.broadcast %c2_i32 : i32 to vector<4x4xi32>
    %43 = arith.cmpi eq, %33, %42 : vector<4x4xi32>
    %44 = vector.shape_cast %30 : vector<4x1xf32> to vector<4x1xf32>
    %45 = vector.broadcast %44 : vector<4x1xf32> to vector<4x4xf32>
    %46 = vector.shape_cast %32 : vector<4x1xf32> to vector<4x1xf32>
    %47 = vector.broadcast %46 : vector<4x1xf32> to vector<4x4xf32>
    %48 = arith.select %43, %45, %47 : vector<4x4xi1>, vector<4x4xf32>
    %49 = arith.select %39, %41, %48 : vector<4x4xi1>, vector<4x4xf32>
    %50 = arith.select %35, %37, %49 : vector<4x4xi1>, vector<4x4xf32>
    %51 = vector.shape_cast %50 : vector<4x4xf32> to vector<1x1x4x4xf32>
    %c0_11 = arith.constant 0 : index
    %c0_12 = arith.constant 0 : index
    %c0_13 = arith.constant 0 : index
    %c0_14 = arith.constant 0 : index
    %52 = vector.load %arg4[%c0_11, %c0_12, %c0_13, %c0_14] : memref<1x1x4x4xf32, #tpu.memory_space<vmem>>, vector<1x1x4x4xf32>
    tpu.vector_store %arg4[%c0_11, %c0_12, %c0_13, %c0_14], %51 {strides = array<i32>} : memref<1x1x4x4xf32, #tpu.memory_space<vmem>>, vector<1x1x4x4xf32>,
    return
  }
  func.func @transform_0(%arg0: i32, %arg1: i32) -> (i32, i32, i32) {
    %c0_i32 = arith.constant 0 : i32
    %c0_i32_0 = arith.constant 0 : i32
    return %arg0, %c0_i32, %arg1 : i32, i32, i32
  }
  func.func @transform_1(%arg0: i32, %arg1: i32) -> (i32, i32, i32) {
    %c0_i32 = arith.constant 0 : i32
    %c0_i32_0 = arith.constant 0 : i32
    return %arg0, %c0_i32, %arg1 : i32, i32, i32
  }
  func.func @transform_2(%arg0: i32, %arg1: i32) -> (i32, i32, i32, i32) {
    %c0_i32 = arith.constant 0 : i32
    %c0_i32_0 = arith.constant 0 : i32
    %c0_i32_1 = arith.constant 0 : i32
    return %arg0, %arg1, %c0_i32, %c0_i32_0 : i32, i32, i32, i32
  }
}

</mosaic_0001>

<llo_original>
// kernel: tpu_custom_call.1
$region0: #{tpu_custom_call.1}
  #allocation0 [shape = 'u32[]', space=smem, size = 0x4, offset = 0x4, fixed_abs, tag = 'smem constant byte address 0x4 - core index']
  #allocation1 [shape = 'u32[144,128]{1,0:T(1,128)}', space=vmem, size = 0x12000, scoped, tag = 'internal scratch']
  %s0 = inlined_call_operand.hbm [shape: bf16[2,4,256], index: 0, kind: input, shape index: {}]
  %s1 = inlined_call_operand.hbm [shape: bf16[2,4,256], index: 1, kind: input, shape index: {}]
  %s2 = inlined_call_operand.hbm [shape: f32[2,1,4,4], index: 2, kind: output, shape index: {}]
  %s3 = sld [smem:[#allocation0]]
  $region49: #{tpu_custom_call.1} parent=0
    _
  %s5 = ssub.s32 1, %s3
  %s6 = scalar_select 0, %s5, %s3
  $region1: #{tpu_custom_call.1} parent=0
    #allocation2 [shape = 'u8[4096]{0}', space=vmem, size = 0x1000, scoped, tag = 'input window, operand 0']
    #allocation3 [shape = 's32[2]{0}', space=sflag, size = 0x8, scoped, tag = 'scoped memory for tpu_custom_call.1']
    #allocation4 [shape = 's32[2]{0}', space=sflag, size = 0x8, scoped, tag = 'scoped memory for tpu_custom_call.1']
    #allocation5 [shape = 'u8[4096]{0}', space=vmem, size = 0x1000, scoped, tag = 'input window, operand 1']
    #allocation6 [shape = 's32[2]{0}', space=sflag, size = 0x8, scoped, tag = 'scoped memory for tpu_custom_call.1']
    #allocation7 [shape = 'u8[4096]{0}', space=vmem, size = 0x1000, scoped, tag = 'output window, operand 0']
    %7 = vsyncpa [#allocation3], 0
    %s8 = scalar_lea.sflag [#allocation3], 1
    %9 = vsyncpa %s8, 0
    %10 = vsyncpa [#allocation6], 0
    %s11 = scalar_lea.sflag [#allocation6], 1
    %12 = vsyncpa %s11, 0
    %13 = vsyncpa [#allocation4], 0
    %s14 = scalar_lea.sflag [#allocation4], 1
    %15 = vsyncpa %s14, 0
    loop: start=0, step=1, limit=4
    $region2: #{tpu_custom_call.1} parent=1 // loop_pre_header
      _
    $region3: #{tpu_custom_call.1} parent=1 // loop_header
      %s17 = sphi 0, %s21
      %p18 = scmp.ge.s32.totalorder %s17, 4
      %s24 = sphi 0, %s36
      %s25 = sphi 0, %s32
      %s26 = sphi 0, %s24
      %s27 = sphi 0, %s25
      %s28 = sphi 0, %s26
      %s29 = sphi 0, %s27
      %s41 = sphi 0, %s43
      %s44 = sphi 0, %s41
      %s45 = sphi 0, %s44
      %s61 = sphi 0, %s45
      %s69 = sphi 0, %s71
      %s72 = sphi 0, %s69
      %s73 = sphi 0, %s72
      %s89 = sphi 0, %s73
      %s97 = sphi 0, %s99
      %s100 = sphi 0, %s97
      %s101 = sphi 0, %s100
      %s117 = sphi 0, %s101
    $region4: #{tpu_custom_call.1} parent=1 // loop_header_branch
      %20 = sbr.rel (%p18) target = $region8
    $region5: #{tpu_custom_call.1} parent=1 // loop_body
      %s22 = ssub.s32 %s17, 1
      %s23 = ssub.s32 %s17, 2
      %s30 = sadd.s32 1, %s25
      %p31 = scmp.ge.s32.totalorder %s30, 1
      %s32 = scalar_select %p31, 0, %s30
      %s33 = sadd.s32 1, %s24
      %s34 = scalar_select %p31, %s33, %s24
      %p35 = scmp.ge.s32.totalorder %s34, 2
      %s36 = scalar_select %p35, 0, %s34
      %s37 = ssub.s32 %s24, %s36
      %s38 = ssub.s32 %s25, %s32
      %s39 = sor.u32 %s37, %s38
      %p40 = scmp.eq.s32.totalorder %s39, 0
      %s42 = sadd.s32 %s41, 1
      %s43 = scalar_select %p40, %s41, %s42
      %p46 = pneg %p40
      %p47 = scmp.eq.s32.totalorder %s17, 1
      %p48 = por %p46, %p47
      %p49 = scmp.ne.s32.totalorder %s41, %s44
      %p50 = scmp.eq.s32.totalorder %s17, 0
      %p51 = por %p49, %p50
      %p52 = scmp.ne.s32.totalorder %s41, %s44
      %p53 = scmp.eq.s32.totalorder %s22, 1
      %p54 = por %p52, %p53
      %p55 = scmp.ne.s32.totalorder %s44, %s45
      %p56 = scmp.eq.s32.totalorder %s22, 0
      %p57 = por %p55, %p56
      %p58 = scmp.ne.s32.totalorder %s44, %s45
      %p59 = scmp.eq.s32.totalorder %s23, 1
      %p60 = por %p58, %p59
      %p62 = scmp.ne.s32.totalorder %s45, %s61
      %p63 = scmp.eq.s32.totalorder %s23, 0
      %p64 = por %p62, %p63
      %s65 = ssub.s32 %s24, %s36
      %s66 = ssub.s32 %s25, %s32
      %s67 = sor.u32 %s65, %s66
      %p68 = scmp.eq.s32.totalorder %s67, 0
      %s70 = sadd.s32 %s69, 1
      %s71 = scalar_select %p68, %s69, %s70
      %p74 = pneg %p68
      %p75 = scmp.eq.s32.totalorder %s17, 1
      %p76 = por %p74, %p75
      %p77 = scmp.ne.s32.totalorder %s69, %s72
      %p78 = scmp.eq.s32.totalorder %s17, 0
      %p79 = por %p77, %p78
      %p80 = scmp.ne.s32.totalorder %s69, %s72
      %p81 = scmp.eq.s32.totalorder %s22, 1
      %p82 = por %p80, %p81
      %p83 = scmp.ne.s32.totalorder %s72, %s73
      %p84 = scmp.eq.s32.totalorder %s22, 0
      %p85 = por %p83, %p84
      %p86 = scmp.ne.s32.totalorder %s72, %s73
      %p87 = scmp.eq.s32.totalorder %s23, 1
      %p88 = por %p86, %p87
      %p90 = scmp.ne.s32.totalorder %s73, %s89
      %p91 = scmp.eq.s32.totalorder %s23, 0
      %p92 = por %p90, %p91
      %s93 = ssub.s32 %s24, %s36
      %s94 = ssub.s32 %s25, %s32
      %s95 = sor.u32 %s93, %s94
      %p96 = scmp.eq.s32.totalorder %s95, 0
      %s98 = sadd.s32 %s97, 1
      %s99 = scalar_select %p96, %s97, %s98
      %p102 = pneg %p96
      %p103 = scmp.eq.s32.totalorder %s17, 1
      %p104 = por %p102, %p103
      %p105 = scmp.ne.s32.totalorder %s97, %s100
      %p106 = scmp.eq.s32.totalorder %s17, 0
      %p107 = por %p105, %p106
      %p108 = scmp.ne.s32.totalorder %s97, %s100
      %p109 = scmp.eq.s32.totalorder %s22, 1
      %p110 = por %p108, %p109
      %p111 = scmp.ne.s32.totalorder %s100, %s101
      %p112 = scmp.eq.s32.totalorder %s22, 0
      %p113 = por %p111, %p112
      %p114 = scmp.ne.s32.totalorder %s100, %s101
      %p115 = scmp.eq.s32.totalorder %s23, 1
      %p116 = por %p114, %p115
      %p118 = scmp.ne.s32.totalorder %s101, %s117
      %p119 = scmp.eq.s32.totalorder %s23, 0
      %p120 = por %p118, %p119
      %p121 = scmp.le.s32.totalorder 1, %s17
      %p122 = scmp.lt.s32.totalorder %s17, 3
      %p123 = pnand %p121, %p122
      %p124 = pneg %p123
      // Predicated region
      $region9: #{tpu_custom_call.1} parent=5 // pred_check
        _
      $region10: #{tpu_custom_call.1} parent=5 // pred_check_branch
        %126 = sbr.rel (%p123) target = $region12
      $region11: #{tpu_custom_call.1} parent=5 // pred_region
        %s127 = ssub.s32 %s17, 1
      $region12: #{tpu_custom_call.1} parent=5 // pred_fallthru
        _
      %p128 = scmp.lt.s32.totalorder %s17, 2
      // Predicated region
      $region13: #{tpu_custom_call.1} parent=5 // pred_check
        %p129 = pneg %p128
      $region14: #{tpu_custom_call.1} parent=5 // pred_check_branch
        %131 = sbr.rel (%p129) target = $region16
      $region15: #{tpu_custom_call.1} parent=5 // pred_region
        // Predicated region
        $region17: #{tpu_custom_call.1} parent=15 // pred_check
          %p132 = pneg %p51
        $region18: #{tpu_custom_call.1} parent=15 // pred_check_branch
          %134 = sbr.rel (%p132) target = $region20
        $region19: #{tpu_custom_call.1} parent=15 // pred_region
          %s135 = sand.u32 %s41, 1
          %s136 = scalar_lea.sflag [#allocation3], %s135
          %s137 = sand.u32 %s41, 1
          %s138 = smul.addr %s137, 4
          %s139 = scalar_lea.vmem [#allocation2], %s138
          %s140 = smul.u32 2, %s25
          %s142 = ssub.s32 64, 64
          %143 = vsyncadd %s136, %s142
          %s144 = smul.addr %s24, 2
          %s145 = sadd.s32 %s140, %s144
          %s146 = smul.addr %s145, 32
          %s147 = scalar_lea.hbm %s0, %s146
          %s149 = sshll.u32 %s139, 4
          %s150 = int_to_ptr.vmem [resolvable:$true] %s149
          %152 = dma.hbm_to_vmem [thread:$0]  %s147, 64, %s150, %s136
        $region20: #{tpu_custom_call.1} parent=15 // pred_fallthru
          _
        // Predicated region
        $region21: #{tpu_custom_call.1} parent=15 // pred_check
          %p153 = pneg %p79
        $region22: #{tpu_custom_call.1} parent=15 // pred_check_branch
          %155 = sbr.rel (%p153) target = $region24
        $region23: #{tpu_custom_call.1} parent=15 // pred_region
          %s156 = sand.u32 %s69, 1
          %s157 = scalar_lea.sflag [#allocation6], %s156
          %s158 = sand.u32 %s69, 1
          %s159 = smul.addr %s158, 4
          %s160 = scalar_lea.vmem [#allocation5], %s159
          %s161 = smul.u32 2, %s25
          %s163 = ssub.s32 64, 64
          %164 = vsyncadd %s157, %s163
          %s165 = smul.addr %s24, 2
          %s166 = sadd.s32 %s161, %s165
          %s167 = smul.addr %s166, 32
          %s168 = scalar_lea.hbm %s1, %s167
          %s170 = sshll.u32 %s160, 4
          %s171 = int_to_ptr.vmem [resolvable:$true] %s170
          %173 = dma.hbm_to_vmem [thread:$0]  %s168, 64, %s171, %s157
        $region24: #{tpu_custom_call.1} parent=15 // pred_fallthru
          _
      $region16: #{tpu_custom_call.1} parent=5 // pred_fallthru
        _
      %p174 = scmp.le.s32.totalorder 1, %s17
      %p175 = scmp.lt.s32.totalorder %s17, 3
      %p176 = pnand %p174, %p175
      %p177 = pneg %p176
      // Predicated region
      $region25: #{tpu_custom_call.1} parent=5 // pred_check
        _
      $region26: #{tpu_custom_call.1} parent=5 // pred_check_branch
        %179 = sbr.rel (%p176) target = $region28
      $region27: #{tpu_custom_call.1} parent=5 // pred_region
        %s180 = ssub.s32 %s17, 1
        %s181 = sand.u32 %s44, 1
        %s182 = scalar_lea.sflag [#allocation3], %s181
        %s183 = sand.u32 %s44, 1
        %s184 = smul.addr %s183, 4
        %s185 = scalar_lea.vmem [#allocation2], %s184
        // Predicated region
        $region29: #{tpu_custom_call.1} parent=27 // pred_check
          %p186 = pneg %p57
        $region30: #{tpu_custom_call.1} parent=27 // pred_check_branch
          %188 = sbr.rel (%p186) target = $region32
        $region31: #{tpu_custom_call.1} parent=27 // pred_region
          %189 = dma.done %s182, 64
        $region32: #{tpu_custom_call.1} parent=27 // pred_fallthru
          _
        %s190 = sand.u32 %s72, 1
        %s191 = scalar_lea.sflag [#allocation6], %s190
        %s192 = sand.u32 %s72, 1
        %s193 = smul.addr %s192, 4
        %s194 = scalar_lea.vmem [#allocation5], %s193
        // Predicated region
        $region33: #{tpu_custom_call.1} parent=27 // pred_check
          %p195 = pneg %p85
        $region34: #{tpu_custom_call.1} parent=27 // pred_check_branch
          %197 = sbr.rel (%p195) target = $region36
        $region35: #{tpu_custom_call.1} parent=27 // pred_region
          %198 = dma.done %s191, 64
        $region36: #{tpu_custom_call.1} parent=27 // pred_fallthru
          _
        %s199 = sand.u32 %s44, 1
        %s200 = scalar_lea.sflag [#allocation3], %s199
        %s201 = sand.u32 %s44, 1
        %s202 = smul.addr %s201, 4
        %s203 = scalar_lea.vmem [#allocation2], %s202
        %p204 = pneg %p57
        %p205 = pneg %p54
        %s206 = sand.u32 %s72, 1
        %s207 = scalar_lea.sflag [#allocation6], %s206
        %s208 = sand.u32 %s72, 1
        %s209 = smul.addr %s208, 4
        %s210 = scalar_lea.vmem [#allocation5], %s209
        %p211 = pneg %p85
        %p212 = pneg %p82
        %p213 = pneg %p113
        %p214 = pneg %p110
        %s215 = sand.u32 %s100, 1
        %s216 = scalar_lea.sflag [#allocation4], %s215
        %s217 = sand.u32 %s100, 1
        %s218 = smul.addr %s217, 4
        %s219 = scalar_lea.vmem [#allocation7], %s218
        %s220 = smul.u32 2, %s27
        %s221 = smul.u32 2, %s27
        %v222 = vld [vmem:[%s185] sm:$0xf]
        %v223 = vunpack.c.l.bf16 %v222
        %v224 = vld [vmem:[%s194] sm:$0xf]
        %v225 = vunpack.c.l.bf16 %v224
        %v227 = vcombine.high %v223, %v223
        %vm229 = vcmask 1043456
        %v230 = vsel %vm229, %v223, -inf
        %v231 = vrot.slane %v230, 4
        %v232 = vmax.f32 %v230, %v231
        %v233 = vrot.slane %v232, 2
        %v234 = vmax.f32 %v232, %v233
        %v235 = vrot.slane %v234, 1
        %v236 = vmax.f32 %v234, %v235
        %v237 = vsel %vm229, %v227, -inf
        %v238 = vrot.slane %v237, 4
        %v239 = vmax.f32 %v237, %v238
        %v240 = vrot.slane %v239, 2
        %v241 = vmax.f32 %v239, %v240
        %v242 = vrot.slane %v241, 1
        %v243 = vmax.f32 %v241, %v242
        %v246 = vcombine.low %v236, %v243
        %v248 = vsub.f32 %v223, %v246
        %v249 = vmul.f32 %v248, 1.442695
        %v250 = vpow.pop %v249
        %v252 = vcombine.high %v250, %v250
        %v254 = vsel %vm229, %v250, 0.0
        %v255 = vrot.slane %v254, 4
        %v256 = vadd.f32 %v254, %v255
        %v257 = vrot.slane %v256, 2
        %v258 = vadd.f32 %v256, %v257
        %v259 = vrot.slane %v258, 1
        %v260 = vadd.f32 %v258, %v259
        %v261 = vsel %vm229, %v252, 0.0
        %v262 = vrot.slane %v261, 4
        %v263 = vadd.f32 %v261, %v262
        %v264 = vrot.slane %v263, 2
        %v265 = vadd.f32 %v263, %v264
        %v266 = vrot.slane %v265, 1
        %v267 = vadd.f32 %v265, %v266
        %v268 = vlog2.pop %v260
        %v269 = vmul.f32 %v268, 0.6931472
        %v270 = vlog2.pop %v267
        %v271 = vmul.f32 %v270, 0.6931472
        %v274 = vcombine.low %v269, %v271
        %v276 = vsub.f32 %v248, %v274
        %v277 = vrcp.pop %v260
        %v278 = vrcp.pop %v267
        %v281 = vcombine.low %v277, %v278
        %v283 = vmul.f32 %v250, %v281
        %v284 = vmul.f32 %v225, %v276
        %v286 = vcombine.high %v284, %v284
        %v288 = vsel %vm229, %v284, 0.0
        %v289 = vsel %vm229, %v286, 0.0
        %v290 = vadd.f32 %v288, %v289
        %291 = vadd.xlane.f32.xlu0 %v290
        %v292 = vpop.xlane.xlu0 %291
        %v293 = vsub.f32 0.0, %v292
        %v294 = vmul.f32 %v283, %v225
        %v296 = vcombine.high %v294, %v294
        %v298 = vsel %vm229, %v294, 0.0
        %v299 = vsel %vm229, %v296, 0.0
        %v300 = vadd.f32 %v298, %v299
        %301 = vadd.xlane.f32.xlu0 %v300
        %v302 = vpop.xlane.xlu0 %301
        %v304 = vcombine.high %v283, %v283
        %v306 = vsel %vm229, %v283, 0.0
        %v307 = vsel %vm229, %v304, 0.0
        %v308 = vadd.f32 %v306, %v307
        %309 = vadd.xlane.f32.xlu0 %v308
        %v310 = vpop.xlane.xlu0 %309
        %v312 = vcombine.high %v225, %v225
        %v314 = vsel %vm229, %v225, 0.0
        %v315 = vsel %vm229, %v312, 0.0
        %v316 = vadd.f32 %v314, %v315
        %317 = vadd.xlane.f32.xlu0 %v316
        %v318 = vpop.xlane.xlu0 %317
        %v319 = vlaneseq
        %v320 = vand.u32 %v319, 127
        %vm321 = vcmp.eq.s32.totalorder %v320, 0
        %vm322 = vcmp.eq.s32.totalorder %v320, 1
        %vm323 = vcmp.eq.s32.totalorder %v320, 2
        %v324 = vsel %vm323, %v310, %v318
        %v325 = vsel %vm322, %v302, %v324
        %v326 = vsel %vm321, %v293, %v325
        %vm327 = vcmask 27648
        %328 = vst.msk [vmem:[%s219] sm:$0xf] %vm327, %v326
        %s329 = sand.u32 %s100, 1
        %s330 = scalar_lea.sflag [#allocation4], %s329
        %s331 = sand.u32 %s100, 1
        %s332 = smul.addr %s331, 4
        %s333 = scalar_lea.vmem [#allocation7], %s332
        // Predicated region
        $region37: #{tpu_custom_call.1} parent=27 // pred_check
          %p334 = pneg %p110
        $region38: #{tpu_custom_call.1} parent=27 // pred_check_branch
          %336 = sbr.rel (%p334) target = $region40
        $region39: #{tpu_custom_call.1} parent=27 // pred_region
          %s338 = ssub.s32 64, 64
          %339 = vsyncadd %s330, %s338
          %s340 = sadd.s32 %s27, %s26
          %s341 = smul.addr %s340, 64
          %s342 = scalar_lea.hbm %s2, %s341
          %s344 = sshll.u32 %s333, 4
          %s345 = int_to_ptr.vmem [resolvable:$true] %s344
          %347 = dma.vmem_to_hbm [thread:$0]  %s345, 64, %s342, %s330
        $region40: #{tpu_custom_call.1} parent=27 // pred_fallthru
          _
      $region28: #{tpu_custom_call.1} parent=5 // pred_fallthru
        _
      %p348 = scmp.le.s32.totalorder 2, %s17
      // Predicated region
      $region41: #{tpu_custom_call.1} parent=5 // pred_check
        %p349 = pneg %p348
      $region42: #{tpu_custom_call.1} parent=5 // pred_check_branch
        %351 = sbr.rel (%p349) target = $region44
      $region43: #{tpu_custom_call.1} parent=5 // pred_region
        %s352 = ssub.s32 %s17, 2
        // Predicated region
        $region45: #{tpu_custom_call.1} parent=43 // pred_check
          %p353 = pneg %p116
        $region46: #{tpu_custom_call.1} parent=43 // pred_check_branch
          %355 = sbr.rel (%p353) target = $region48
        $region47: #{tpu_custom_call.1} parent=43 // pred_region
          %s356 = sand.u32 %s101, 1
          %s357 = scalar_lea.sflag [#allocation4], %s356
          %s358 = sand.u32 %s101, 1
          %s359 = smul.addr %s358, 4
          %s360 = scalar_lea.vmem [#allocation7], %s359
          %361 = dma.done %s357, 64
        $region48: #{tpu_custom_call.1} parent=43 // pred_fallthru
          _
      $region44: #{tpu_custom_call.1} parent=5 // pred_fallthru
        _
    $region6: #{tpu_custom_call.1} parent=1 // loop_footer
      %s21 = sadd.s32 1, %s17
    $region7: #{tpu_custom_call.1} parent=1 // loop_footer_branch
      %16 = sbr.rel target = $region3
    $region8: #{tpu_custom_call.1} parent=1 // loop_exit
      _
    %362 = vsyncpa [#allocation3], 1
    %s363 = scalar_lea.sflag [#allocation3], 1
    %364 = vsyncpa %s363, 1
    %365 = vsyncpa [#allocation6], 1
    %s366 = scalar_lea.sflag [#allocation6], 1
    %367 = vsyncpa %s366, 1
    %368 = vsyncpa [#allocation4], 1
    %s369 = scalar_lea.sflag [#allocation4], 1
    %370 = vsyncpa %s369, 1

</llo_original>
